<compile_context>
chip_gen: v7x
topology: tpu7x:2x2x1
jax: 0.10.0
libtpu: 0.0.40
codegen_flags: <defaults>
</compile_context>

<pallas_src>
import functools

import jax
import jax.numpy as jnp
from jax import lax
from jax.experimental import pallas as pl
from jax.experimental.pallas import tpu as pltpu


def _layernorm_kernel(x_ref, w_ref, b_ref, o_ref, *, seg_size, num_segs, eps):
    # x_ref/o_ref: (tr, num_segs * seg_size) tile; w_ref/b_ref: (1, seg_size).
    x = x_ref[...].astype(jnp.float32)
    w = w_ref[...].astype(jnp.float32)          # (1, C) broadcasts over rows
    b = b_ref[...].astype(jnp.float32)
    # Static unroll over the folded segments (num_segs == 1 when C >= 128).
    for j in range(num_segs):
        sl = slice(j * seg_size, (j + 1) * seg_size)
        xs = x[:, sl]
        mu = jnp.mean(xs, axis=-1, keepdims=True)
        xc = xs - mu
        var = jnp.mean(xc * xc, axis=-1, keepdims=True)      # unbiased=False
        inv = lax.rsqrt(var + eps)
        o_ref[:, sl] = (xc * inv * w + b).astype(o_ref.dtype)


def withbias_layernorm(x, weight, bias, *, eps=1e-5, block_bytes=2 * 1024 * 1024):
    """x: (..., C); weight, bias: (C,).  Returns same shape/dtype as x."""
    orig_shape = x.shape
    C = orig_shape[-1]
    x2 = x.reshape(-1, C)
    N = x2.shape[0]
    itemsize = jnp.dtype(x.dtype).itemsize

    # Keep 2 in-buffers + 2 out-buffers comfortably inside v7x's 64 MiB VMEM.
    block_bytes = min(int(block_bytes), 6 * 1024 * 1024)

    # --- lane-dense folding: make the HBM-facing last dim a multiple of 128 ---
    k = 1
    if C < 128 and 128 % C == 0:
        k = 128 // C
        while k > 1 and N % k != 0:
            k //= 2
    # TODO(synk): C < 128 with 128 % C != 0 stays on the narrow-lane path
    # (correct, but HBM stores are masked / not lane-dense).
    M, L = N // k, k * C
    x3 = x2.reshape(M, L)

    # --- dtype-aware sublane multiple: 8 (f32) / 16 (bf16) / 32 (int8/fp8) ---
    sub = max(8, 32 // itemsize)

    # --- byte-budgeted row tile + cdiv grid (no divisor search) ---
    row_bytes = L * itemsize
    tr = max(sub, (block_bytes // row_bytes) // sub * sub)
    # Keep >= ~4 grid steps when there is enough work (v7x megacore + pipelining).
    min_steps = 4
    if M >= min_steps * sub:
        tr = min(tr, pl.cdiv(pl.cdiv(M, min_steps), sub) * sub)
    # Don't allocate a block bigger than the (sublane-rounded) row count.
    tr = min(tr, pl.cdiv(M, sub) * sub)
    grid = (pl.cdiv(M, tr),)

    # --- explicit scoped-VMEM budget (v5e default is only 16 MiB) ---
    blk_bytes = tr * L * itemsize
    # double-buffered x in + double-buffered out + resident weight/bias + headroom
    vmem_needed = 4 * blk_bytes + 2 * C * 4 + (1 << 20)
    vmem_limit = int(min(max(2 * vmem_needed, 32 << 20), 64 << 20))

    kernel = functools.partial(_layernorm_kernel, seg_size=C, num_segs=k, eps=eps)
    out = pl.pallas_call(
        kernel,
        out_shape=jax.ShapeDtypeStruct((M, L), x.dtype),
        grid_spec=pltpu.PrefetchScalarGridSpec(
            num_scalar_prefetch=0,
            grid=grid,
            in_specs=[
                pl.BlockSpec((tr, L), lambda i: (i, 0)),   # x rows tile (lane-dense)
                pl.BlockSpec((1, C), lambda i: (0, 0)),    # weight (resident)
                pl.BlockSpec((1, C), lambda i: (0, 0)),    # bias (resident)
            ],
            out_specs=pl.BlockSpec((tr, L), lambda i: (i, 0)),
        ),
        compiler_params=pltpu.CompilerParams(
            dimension_semantics=("parallel",),
            vmem_limit_bytes=vmem_limit,
        ),
    )(x3, weight.reshape(1, C), bias.reshape(1, C))
    return out.reshape(orig_shape)


if __name__ == "__main__":
    key = jax.random.PRNGKey(0)

    B, S, C = 2, 64, 32                     # batch=2, tokens=64, hidden=32
    x = jax.random.normal(key, (B, S, C), dtype=jnp.float32)

    # Parameters as in WithBias_LayerNorm.__init__: ones / zeros of shape (C,)
    weight = jnp.ones((C,), dtype=jnp.float32)
    bias = jnp.zeros((C,), dtype=jnp.float32)

    y = withbias_layernorm(x, weight, bias)
    y = jax.block_until_ready(y)

    # Pure-JAX reference (same math as the PyTorch forward)
    mu = jnp.mean(x, axis=-1, keepdims=True)
    var = jnp.mean((x - mu) ** 2, axis=-1, keepdims=True)
    y_ref = (x - mu) / jnp.sqrt(var + 1e-5) * weight + bias

    assert y.shape == x.shape and y.dtype == x.dtype
    assert jnp.max(jnp.abs(y - y_ref)) < 1e-5

    print("KERNEL_OK")
</pallas_src>

<mosaic_0001>
module attributes {stable_mosaic.version = 11 : i64} {
  func.func @_layernorm_kernel(%arg0: i32, %arg1: memref<8x128xf32, #tpu.memory_space<vmem>>, %arg2: memref<1x32xf32, #tpu.memory_space<vmem>>, %arg3: memref<1x32xf32, #tpu.memory_space<vmem>>, %arg4: memref<8x128xf32, #tpu.memory_space<vmem>>) attributes {dimension_semantics = [#tpu.dimension_semantics<parallel>], iteration_bounds = array<i64: 4>, scalar_prefetch = 0 : i64, scratch_operands = 0 : i64, tpu.core_type = #tpu.core_type<tc>, window_params = [{transform_indices = @transform_0, window_bounds = array<i64: 8, 128>}, {pipeline_mode = #tpu.pipeline_mode<synchronous>, transform_indices = @transform_1, window_bounds = array<i64: 1, 32>}, {pipeline_mode = #tpu.pipeline_mode<synchronous>, transform_indices = @transform_2, window_bounds = array<i64: 1, 32>}, {transform_indices = @transform_3, window_bounds = array<i64: 8, 128>}]} {
    %c0 = arith.constant 0 : index
    %c0_0 = arith.constant 0 : index
    %0 = vector.load %arg1[%c0, %c0_0] : memref<8x128xf32, #tpu.memory_space<vmem>>, vector<8x128xf32>
    %c0_1 = arith.constant 0 : index
    %c0_2 = arith.constant 0 : index
    %1 = vector.load %arg2[%c0_1, %c0_2] : memref<1x32xf32, #tpu.memory_space<vmem>>, vector<1x32xf32>
    %c0_3 = arith.constant 0 : index
    %c0_4 = arith.constant 0 : index
    %2 = vector.load %arg3[%c0_3, %c0_4] : memref<1x32xf32, #tpu.memory_space<vmem>>, vector<1x32xf32>
    %3 = vector.extract_strided_slice %0 {offsets = [0, 0], sizes = [8, 32], strides = [1, 1]} : vector<8x128xf32> to vector<8x32xf32>
    %cst = arith.constant dense<0.000000e+00> : vector<8xf32>
    %4 = vector.multi_reduction <add>, %3, %cst [1] : vector<8x32xf32> to vector<8xf32>
    %5 = vector.shape_cast %4 : vector<8xf32> to vector<8x1xf32>
    %cst_5 = arith.constant 3.200000e+01 : f32
    %6 = vector.broadcast %cst_5 : f32 to vector<8x1xf32>
    %7 = arith.divf %5, %6 : vector<8x1xf32>
    %8 = vector.broadcast %7 : vector<8x1xf32> to vector<8x32xf32>
    %9 = arith.subf %3, %8 : vector<8x32xf32>
    %10 = arith.mulf %9, %9 : vector<8x32xf32>
    %cst_6 = arith.constant dense<0.000000e+00> : vector<8xf32>
    %11 = vector.multi_reduction <add>, %10, %cst_6 [1] : vector<8x32xf32> to vector<8xf32>
    %12 = vector.shape_cast %11 : vector<8xf32> to vector<8x1xf32>
    %cst_7 = arith.constant 3.200000e+01 : f32
    %13 = vector.broadcast %cst_7 : f32 to vector<8x1xf32>
    %14 = arith.divf %12, %13 : vector<8x1xf32>
    %cst_8 = arith.constant 9.99999974E-6 : f32
    %15 = vector.broadcast %cst_8 : f32 to vector<8x1xf32>
    %16 = arith.addf %14, %15 : vector<8x1xf32>
    %17 = math.rsqrt %16 : vector<8x1xf32>
    %18 = vector.broadcast %17 : vector<8x1xf32> to vector<8x32xf32>
    %19 = arith.mulf %9, %18 : vector<8x32xf32>
    %20 = vector.broadcast %1 : vector<1x32xf32> to vector<8x32xf32>
    %21 = arith.mulf %19, %20 : vector<8x32xf32>
    %22 = vector.broadcast %2 : vector<1x32xf32> to vector<8x32xf32>
    %23 = arith.addf %21, %22 : vector<8x32xf32>
    %c0_9 = arith.constant 0 : index
    %c0_10 = arith.constant 0 : index
    %24 = vector.load %arg4[%c0_9, %c0_10] : memref<8x128xf32, #tpu.memory_space<vmem>>, vector<8x32xf32>
    tpu.vector_store %arg4[%c0_9, %c0_10], %23 {strides = array<i32>} : memref<8x128xf32, #tpu.memory_space<vmem>>, vector<8x32xf32>,
    %25 = vector.extract_strided_slice %0 {offsets = [0, 32], sizes = [8, 32], strides = [1, 1]} : vector<8x128xf32> to vector<8x32xf32>
    %cst_11 = arith.constant dense<0.000000e+00> : vector<8xf32>
    %26 = vector.multi_reduction <add>, %25, %cst_11 [1] : vector<8x32xf32> to vector<8xf32>
    %27 = vector.shape_cast %26 : vector<8xf32> to vector<8x1xf32>
    %cst_12 = arith.constant 3.200000e+01 : f32
    %28 = vector.broadcast %cst_12 : f32 to vector<8x1xf32>
    %29 = arith.divf %27, %28 : vector<8x1xf32>
    %30 = vector.broadcast %29 : vector<8x1xf32> to vector<8x32xf32>
    %31 = arith.subf %25, %30 : vector<8x32xf32>
    %32 = arith.mulf %31, %31 : vector<8x32xf32>
    %cst_13 = arith.constant dense<0.000000e+00> : vector<8xf32>
    %33 = vector.multi_reduction <add>, %32, %cst_13 [1] : vector<8x32xf32> to vector<8xf32>
    %34 = vector.shape_cast %33 : vector<8xf32> to vector<8x1xf32>
    %cst_14 = arith.constant 3.200000e+01 : f32
    %35 = vector.broadcast %cst_14 : f32 to vector<8x1xf32>
    %36 = arith.divf %34, %35 : vector<8x1xf32>
    %cst_15 = arith.constant 9.99999974E-6 : f32
    %37 = vector.broadcast %cst_15 : f32 to vector<8x1xf32>
    %38 = arith.addf %36, %37 : vector<8x1xf32>
    %39 = math.rsqrt %38 : vector<8x1xf32>
    %40 = vector.broadcast %39 : vector<8x1xf32> to vector<8x32xf32>
    %41 = arith.mulf %31, %40 : vector<8x32xf32>
    %42 = vector.broadcast %1 : vector<1x32xf32> to vector<8x32xf32>
    %43 = arith.mulf %41, %42 : vector<8x32xf32>
    %44 = vector.broadcast %2 : vector<1x32xf32> to vector<8x32xf32>
    %45 = arith.addf %43, %44 : vector<8x32xf32>
    %c0_16 = arith.constant 0 : index
    %c32 = arith.constant 32 : index
    %46 = vector.load %arg4[%c0_16, %c32] : memref<8x128xf32, #tpu.memory_space<vmem>>, vector<8x32xf32>
    tpu.vector_store %arg4[%c0_16, %c32], %45 {strides = array<i32>} : memref<8x128xf32, #tpu.memory_space<vmem>>, vector<8x32xf32>,
    %47 = vector.extract_strided_slice %0 {offsets = [0, 64], sizes = [8, 32], strides = [1, 1]} : vector<8x128xf32> to vector<8x32xf32>
    %cst_17 = arith.constant dense<0.000000e+00> : vector<8xf32>
    %48 = vector.multi_reduction <add>, %47, %cst_17 [1] : vector<8x32xf32> to vector<8xf32>
    %49 = vector.shape_cast %48 : vector<8xf32> to vector<8x1xf32>
    %cst_18 = arith.constant 3.200000e+01 : f32
    %50 = vector.broadcast %cst_18 : f32 to vector<8x1xf32>
    %51 = arith.divf %49, %50 : vector<8x1xf32>
    %52 = vector.broadcast %51 : vector<8x1xf32> to vector<8x32xf32>
    %53 = arith.subf %47, %52 : vector<8x32xf32>
    %54 = arith.mulf %53, %53 : vector<8x32xf32>
    %cst_19 = arith.constant dense<0.000000e+00> : vector<8xf32>
    %55 = vector.multi_reduction <add>, %54, %cst_19 [1] : vector<8x32xf32> to vector<8xf32>
    %56 = vector.shape_cast %55 : vector<8xf32> to vector<8x1xf32>
    %cst_20 = arith.constant 3.200000e+01 : f32
    %57 = vector.broadcast %cst_20 : f32 to vector<8x1xf32>
    %58 = arith.divf %56, %57 : vector<8x1xf32>
    %cst_21 = arith.constant 9.99999974E-6 : f32
    %59 = vector.broadcast %cst_21 : f32 to vector<8x1xf32>
    %60 = arith.addf %58, %59 : vector<8x1xf32>
    %61 = math.rsqrt %60 : vector<8x1xf32>
    %62 = vector.broadcast %61 : vector<8x1xf32> to vector<8x32xf32>
    %63 = arith.mulf %53, %62 : vector<8x32xf32>
    %64 = vector.broadcast %1 : vector<1x32xf32> to vector<8x32xf32>
    %65 = arith.mulf %63, %64 : vector<8x32xf32>
    %66 = vector.broadcast %2 : vector<1x32xf32> to vector<8x32xf32>
    %67 = arith.addf %65, %66 : vector<8x32xf32>
    %c0_22 = arith.constant 0 : index
    %c64 = arith.constant 64 : index
    %68 = vector.load %arg4[%c0_22, %c64] : memref<8x128xf32, #tpu.memory_space<vmem>>, vector<8x32xf32>
    tpu.vector_store %arg4[%c0_22, %c64], %67 {strides = array<i32>} : memref<8x128xf32, #tpu.memory_space<vmem>>, vector<8x32xf32>,
    %69 = vector.extract_strided_slice %0 {offsets = [0, 96], sizes = [8, 32], strides = [1, 1]} : vector<8x128xf32> to vector<8x32xf32>
    %cst_23 = arith.constant dense<0.000000e+00> : vector<8xf32>
    %70 = vector.multi_reduction <add>, %69, %cst_23 [1] : vector<8x32xf32> to vector<8xf32>
    %71 = vector.shape_cast %70 : vector<8xf32> to vector<8x1xf32>
    %cst_24 = arith.constant 3.200000e+01 : f32
    %72 = vector.broadcast %cst_24 : f32 to vector<8x1xf32>
    %73 = arith.divf %71, %72 : vector<8x1xf32>
    %74 = vector.broadcast %73 : vector<8x1xf32> to vector<8x32xf32>
    %75 = arith.subf %69, %74 : vector<8x32xf32>
    %76 = arith.mulf %75, %75 : vector<8x32xf32>
    %cst_25 = arith.constant dense<0.000000e+00> : vector<8xf32>
    %77 = vector.multi_reduction <add>, %76, %cst_25 [1] : vector<8x32xf32> to vector<8xf32>
    %78 = vector.shape_cast %77 : vector<8xf32> to vector<8x1xf32>
    %cst_26 = arith.constant 3.200000e+01 : f32
    %79 = vector.broadcast %cst_26 : f32 to vector<8x1xf32>
    %80 = arith.divf %78, %79 : vector<8x1xf32>
    %cst_27 = arith.constant 9.99999974E-6 : f32
    %81 = vector.broadcast %cst_27 : f32 to vector<8x1xf32>
    %82 = arith.addf %80, %81 : vector<8x1xf32>
    %83 = math.rsqrt %82 : vector<8x1xf32>
    %84 = vector.broadcast %83 : vector<8x1xf32> to vector<8x32xf32>
    %85 = arith.mulf %75, %84 : vector<8x32xf32>
    %86 = vector.broadcast %1 : vector<1x32xf32> to vector<8x32xf32>
    %87 = arith.mulf %85, %86 : vector<8x32xf32>
    %88 = vector.broadcast %2 : vector<1x32xf32> to vector<8x32xf32>
    %89 = arith.addf %87, %88 : vector<8x32xf32>
    %c0_28 = arith.constant 0 : index
    %c96 = arith.constant 96 : index
    %90 = vector.load %arg4[%c0_28, %c96] : memref<8x128xf32, #tpu.memory_space<vmem>>, vector<8x32xf32>
    tpu.vector_store %arg4[%c0_28, %c96], %89 {strides = array<i32>} : memref<8x128xf32, #tpu.memory_space<vmem>>, vector<8x32xf32>,
    return
  }
  func.func @transform_0(%arg0: i32) -> (i32, i32) {
    %c0_i32 = arith.constant 0 : i32
    %c0_i32_0 = arith.constant 0 : i32
    return %arg0, %c0_i32 : i32, i32
  }
  func.func @transform_1(%arg0: i32) -> (i32, i32) {
    %c0_i32 = arith.constant 0 : i32
    %c0_i32_0 = arith.constant 0 : i32
    %c0_i32_1 = arith.constant 0 : i32
    return %c0_i32, %c0_i32_0 : i32, i32
  }
  func.func @transform_2(%arg0: i32) -> (i32, i32) {
    %c0_i32 = arith.constant 0 : i32
    %c0_i32_0 = arith.constant 0 : i32
    %c0_i32_1 = arith.constant 0 : i32
    return %c0_i32, %c0_i32_0 : i32, i32
  }
  func.func @transform_3(%arg0: i32) -> (i32, i32) {
    %c0_i32 = arith.constant 0 : i32
    %c0_i32_0 = arith.constant 0 : i32
    return %arg0, %c0_i32 : i32, i32
  }
}

</mosaic_0001>

<llo_original>
// kernel: tpu_custom_call.1
$region0: #{tpu_custom_call.1}
  #allocation0 [shape = 'u32[]', space=smem, size = 0x4, offset = 0x4, fixed_abs, tag = 'smem constant byte address 0x4 - core index']
  #allocation1 [shape = 'u32[144,128]{1,0:T(1,128)}', space=vmem, size = 0x12000, scoped, tag = 'internal scratch']
  %s0 = inlined_call_operand.hbm [shape: f32[32,128], index: 0, kind: input, shape index: {}]
  %s1 = inlined_call_operand.vmem [shape: f32[1,32], index: 1, kind: input, shape index: {}]
  %s2 = inlined_call_operand.vmem [shape: f32[1,32], index: 2, kind: input, shape index: {}]
  %s3 = inlined_call_operand.hbm [shape: f32[32,128], index: 3, kind: output, shape index: {}]
  %s4 = sld [smem:[#allocation0]]
  $region49: #{tpu_custom_call.1} parent=0
    _
  %s6 = ssub.s32 1, %s4
  %s7 = scalar_select 0, %s6, %s4
  $region1: #{tpu_custom_call.1} parent=0
    #allocation2 [shape = 'u8[8192]{0}', space=vmem, size = 0x2000, scoped, tag = 'input window, operand 0']
    #allocation3 [shape = 's32[2]{0}', space=sflag, size = 0x8, scoped, tag = 'scoped memory for tpu_custom_call.1']
    #allocation4 [shape = 's32[2]{0}', space=sflag, size = 0x8, scoped, tag = 'scoped memory for tpu_custom_call.1']
    #allocation5 [shape = 'u8[8192]{0}', space=vmem, size = 0x2000, scoped, tag = 'output window, operand 0']
    %8 = vsyncpa [#allocation3], 0
    %s9 = scalar_lea.sflag [#allocation3], 1
    %10 = vsyncpa %s9, 0
    %11 = vsyncpa [#allocation4], 0
    %s12 = scalar_lea.sflag [#allocation4], 1
    %13 = vsyncpa %s12, 0
    loop: start=0, step=1, limit=6
    $region2: #{tpu_custom_call.1} parent=1 // loop_pre_header
      _
    $region3: #{tpu_custom_call.1} parent=1 // loop_header
      %s15 = sphi 0, %s19
      %p16 = scmp.ge.s32.totalorder %s15, 6
      %s25 = sphi 0, %s27
      %s28 = sphi 0, %s25
      %s29 = sphi 0, %s28
      %s45 = sphi 0, %s29
      %s49 = sphi 0, %s49
      %s51 = sphi 0, %s49
      %s52 = sphi 0, %s51
      %s66 = sphi 0, %s52
      %s70 = sphi 0, %s70
      %s72 = sphi 0, %s70
      %s73 = sphi 0, %s72
      %s87 = sphi 0, %s73
      %s93 = sphi 0, %s95
      %s96 = sphi 0, %s93
      %s97 = sphi 0, %s96
      %s113 = sphi 0, %s97
    $region4: #{tpu_custom_call.1} parent=1 // loop_header_branch
      %18 = sbr.rel (%p16) target = $region8
    $region5: #{tpu_custom_call.1} parent=1 // loop_body
      %s20 = ssub.s32 %s15, 1
      %s21 = ssub.s32 %s15, 2
      %s22 = sadd.s32 %s15, 1
      %s23 = ssub.s32 %s15, %s22
      %p24 = scmp.eq.s32.totalorder %s23, 0
      %s26 = sadd.s32 %s25, 1
      %s27 = scalar_select %p24, %s25, %s26
      %p30 = pneg %p24
      %p31 = scmp.eq.s32.totalorder %s15, 3
      %p32 = por %p30, %p31
      %p33 = scmp.ne.s32.totalorder %s25, %s28
      %p34 = scmp.eq.s32.totalorder %s15, 0
      %p35 = por %p33, %p34
      %p36 = scmp.ne.s32.totalorder %s25, %s28
      %p37 = scmp.eq.s32.totalorder %s20, 3
      %p38 = por %p36, %p37
      %p39 = scmp.ne.s32.totalorder %s28, %s29
      %p40 = scmp.eq.s32.totalorder %s20, 0
      %p41 = por %p39, %p40
      %p42 = scmp.ne.s32.totalorder %s28, %s29
      %p43 = scmp.eq.s32.totalorder %s21, 3
      %p44 = por %p42, %p43
      %p46 = scmp.ne.s32.totalorder %s29, %s45
      %p47 = scmp.eq.s32.totalorder %s21, 0
      %p48 = por %p46, %p47
      %s50 = sadd.s32 %s49, 1
      %p53 = scmp.eq.s32.totalorder %s15, 3
      %p54 = scmp.ne.s32.totalorder %s49, %s51
      %p55 = scmp.eq.s32.totalorder %s15, 0
      %p56 = por %p54, %p55
      %p57 = scmp.ne.s32.totalorder %s49, %s51
      %p58 = scmp.eq.s32.totalorder %s20, 3
      %p59 = por %p57, %p58
      %p60 = scmp.ne.s32.totalorder %s51, %s52
      %p61 = scmp.eq.s32.totalorder %s20, 0
      %p62 = por %p60, %p61
      %p63 = scmp.ne.s32.totalorder %s51, %s52
      %p64 = scmp.eq.s32.totalorder %s21, 3
      %p65 = por %p63, %p64
      %p67 = scmp.ne.s32.totalorder %s52, %s66
      %p68 = scmp.eq.s32.totalorder %s21, 0
      %p69 = por %p67, %p68
      %s71 = sadd.s32 %s70, 1
      %p74 = scmp.eq.s32.totalorder %s15, 3
      %p75 = scmp.ne.s32.totalorder %s70, %s72
      %p76 = scmp.eq.s32.totalorder %s15, 0
      %p77 = por %p75, %p76
      %p78 = scmp.ne.s32.totalorder %s70, %s72
      %p79 = scmp.eq.s32.totalorder %s20, 3
      %p80 = por %p78, %p79
      %p81 = scmp.ne.s32.totalorder %s72, %s73
      %p82 = scmp.eq.s32.totalorder %s20, 0
      %p83 = por %p81, %p82
      %p84 = scmp.ne.s32.totalorder %s72, %s73
      %p85 = scmp.eq.s32.totalorder %s21, 3
      %p86 = por %p84, %p85
      %p88 = scmp.ne.s32.totalorder %s73, %s87
      %p89 = scmp.eq.s32.totalorder %s21, 0
      %p90 = por %p88, %p89
      %s91 = ssub.s32 %s15, %s22
      %p92 = scmp.eq.s32.totalorder %s91, 0
      %s94 = sadd.s32 %s93, 1
      %s95 = scalar_select %p92, %s93, %s94
      %p98 = pneg %p92
      %p99 = scmp.eq.s32.totalorder %s15, 3
      %p100 = por %p98, %p99
      %p101 = scmp.ne.s32.totalorder %s93, %s96
      %p102 = scmp.eq.s32.totalorder %s15, 0
      %p103 = por %p101, %p102
      %p104 = scmp.ne.s32.totalorder %s93, %s96
      %p105 = scmp.eq.s32.totalorder %s20, 3
      %p106 = por %p104, %p105
      %p107 = scmp.ne.s32.totalorder %s96, %s97
      %p108 = scmp.eq.s32.totalorder %s20, 0
      %p109 = por %p107, %p108
      %p110 = scmp.ne.s32.totalorder %s96, %s97
      %p111 = scmp.eq.s32.totalorder %s21, 3
      %p112 = por %p110, %p111
      %p114 = scmp.ne.s32.totalorder %s97, %s113
      %p115 = scmp.eq.s32.totalorder %s21, 0
      %p116 = por %p114, %p115
      %p117 = scmp.le.s32.totalorder 1, %s15
      %p118 = scmp.lt.s32.totalorder %s15, 5
      %p119 = pnand %p117, %p118
      %p120 = pneg %p119
      // Predicated region
      $region9: #{tpu_custom_call.1} parent=5 // pred_check
        _
      $region10: #{tpu_custom_call.1} parent=5 // pred_check_branch
        %122 = sbr.rel (%p119) target = $region12
      $region11: #{tpu_custom_call.1} parent=5 // pred_region
        %s123 = ssub.s32 %s15, 1
        // Predicated region
        $region13: #{tpu_custom_call.1} parent=11 // pred_check
          %p124 = pneg %p62
        $region14: #{tpu_custom_call.1} parent=11 // pred_check_branch
          %126 = sbr.rel (%p124) target = $region16
        $region15: #{tpu_custom_call.1} parent=11 // pred_region
          _
        $region16: #{tpu_custom_call.1} parent=11 // pred_fallthru
          _
        // Predicated region
        $region17: #{tpu_custom_call.1} parent=11 // pred_check
          %p127 = pneg %p83
        $region18: #{tpu_custom_call.1} parent=11 // pred_check_branch
          %129 = sbr.rel (%p127) target = $region20
        $region19: #{tpu_custom_call.1} parent=11 // pred_region
          _
        $region20: #{tpu_custom_call.1} parent=11 // pred_fallthru
          _
      $region12: #{tpu_custom_call.1} parent=5 // pred_fallthru
        _
      %p130 = scmp.lt.s32.totalorder %s15, 4
      // Predicated region
      $region21: #{tpu_custom_call.1} parent=5 // pred_check
        %p131 = pneg %p130
      $region22: #{tpu_custom_call.1} parent=5 // pred_check_branch
        %133 = sbr.rel (%p131) target = $region24
      $region23: #{tpu_custom_call.1} parent=5 // pred_region
        // Predicated region
        $region25: #{tpu_custom_call.1} parent=23 // pred_check
          %p134 = pneg %p35
        $region26: #{tpu_custom_call.1} parent=23 // pred_check_branch
          %136 = sbr.rel (%p134) target = $region28
        $region27: #{tpu_custom_call.1} parent=23 // pred_region
          %s137 = sand.u32 %s25, 1
          %s138 = scalar_lea.sflag [#allocation3], %s137
          %s139 = sand.u32 %s25, 1
          %s140 = smul.addr %s139, 8
          %s141 = scalar_lea.vmem [#allocation2], %s140
          %s143 = ssub.s32 128, 128
          %144 = vsyncadd %s138, %s143
          %s145 = smul.addr %s15, 128
          %s146 = scalar_lea.hbm %s0, %s145
          %s148 = sshll.u32 %s141, 4
          %s149 = int_to_ptr.vmem [resolvable:$true] %s148
          %151 = dma.hbm_to_vmem [thread:$0]  %s146, 128, %s149, %s138
        $region28: #{tpu_custom_call.1} parent=23 // pred_fallthru
          _
      $region24: #{tpu_custom_call.1} parent=5 // pred_fallthru
        _
      %p152 = scmp.le.s32.totalorder 1, %s15
      %p153 = scmp.lt.s32.totalorder %s15, 5
      %p154 = pnand %p152, %p153
      %p155 = pneg %p154
      // Predicated region
      $region29: #{tpu_custom_call.1} parent=5 // pred_check
        _
      $region30: #{tpu_custom_call.1} parent=5 // pred_check_branch
        %157 = sbr.rel (%p154) target = $region32
      $region31: #{tpu_custom_call.1} parent=5 // pred_region
        %s158 = ssub.s32 %s15, 1
        %s159 = sand.u32 %s28, 1
        %s160 = scalar_lea.sflag [#allocation3], %s159
        %s161 = sand.u32 %s28, 1
        %s162 = smul.addr %s161, 8
        %s163 = scalar_lea.vmem [#allocation2], %s162
        // Predicated region
        $region33: #{tpu_custom_call.1} parent=31 // pred_check
          %p164 = pneg %p41
        $region34: #{tpu_custom_call.1} parent=31 // pred_check_branch
          %166 = sbr.rel (%p164) target = $region36
        $region35: #{tpu_custom_call.1} parent=31 // pred_region
          %167 = dma.done %s160, 128
        $region36: #{tpu_custom_call.1} parent=31 // pred_fallthru
          _
        %s168 = sand.u32 %s28, 1
        %s169 = scalar_lea.sflag [#allocation3], %s168
        %s170 = sand.u32 %s28, 1
        %s171 = smul.addr %s170, 8
        %s172 = scalar_lea.vmem [#allocation2], %s171
        %p173 = pneg %p41
        %p174 = pneg %p38
        %p175 = pneg %p62
        %p176 = pneg %p59
        %p177 = pneg %p83
        %p178 = pneg %p80
        %p179 = pneg %p109
        %p180 = pneg %p106
        %s181 = sand.u32 %s96, 1
        %s182 = scalar_lea.sflag [#allocation4], %s181
        %s183 = sand.u32 %s96, 1
        %s184 = smul.addr %s183, 8
        %s185 = scalar_lea.vmem [#allocation5], %s184
        %v186 = vld [vmem:[%s163] sm:$0xff]
        %v187 = vld [vmem:[%s1] sm:$0x1]
        %v188 = vld [vmem:[%s2] sm:$0x1]
        %vm189 = vcmask 261120
        %v190 = vsel %vm189, %v186, 0.0
        %191 = vadd.xlane.f32.xlu0 %v190
        %v192 = vpop.xlane.xlu0 %191
        %v193 = vrcp.pop 32.0
        %v194 = vmul.f32 %v192, %v193
        %v195 = vsub.f32 %v186, %v194
        %v196 = vmul.f32 %v195, %v195
        %v197 = vsel %vm189, %v196, 0.0
        %198 = vadd.xlane.f32.xlu0 %v197
        %v199 = vpop.xlane.xlu0 %198
        %v200 = vmul.f32 %v199, %v193
        %v201 = vadd.f32 %v200, 1e-05
        %v202 = vrsqrt.pop %v201
        %v203 = vmul.f32 %v195, %v202
        %v205 = vlaneseq
        %v206 = vshrl.u32 %v205, 7
        %v207 = vsub.s32 0, %v206
        %v208 = vrot.slane %v187, %v207
        %v210 = vmul.f32 %v203, %v208
        %v212 = vlaneseq
        %v213 = vshrl.u32 %v212, 7
        %v214 = vsub.s32 0, %v213
        %v215 = vrot.slane %v188, %v214
        %v217 = vadd.f32 %v210, %v215
        %218 = vst.msk [vmem:[%s185] sm:$0xff] %vm189, %v217
        %220 = vrot.lane.b32.xlu0 %v186, 96
        %v221 = vpop.permute.xlu0 %220
        %v223 = vsel %vm189, %v221, 0.0
        %224 = vadd.xlane.f32.xlu0 %v223
        %v225 = vpop.xlane.xlu0 %224
        %v226 = vmul.f32 %v225, %v193
        %v227 = vsub.f32 %v186, %v226
        %v228 = vmul.f32 %v227, %v227
        %230 = vrot.lane.b32.xlu0 %v228, 96
        %v231 = vpop.permute.xlu0 %230
        %v233 = vsel %vm189, %v231, 0.0
        %234 = vadd.xlane.f32.xlu0 %v233
        %v235 = vpop.xlane.xlu0 %234
        %v236 = vmul.f32 %v235, %v193
        %v237 = vadd.f32 %v236, 1e-05
        %v238 = vrsqrt.pop %v237
        %v239 = vmul.f32 %v227, %v238
        %240 = vrot.lane.b32.xlu0 %v208, 32
        %v241 = vpop.permute.xlu0 %240
        %v243 = vmul.f32 %v239, %v241
        %244 = vrot.lane.b32.xlu0 %v215, 32
        %v245 = vpop.permute.xlu0 %244
        %v247 = vadd.f32 %v243, %v245
        %vm248 = vcmask 523520
        %249 = vst.msk [vmem:[%s185] sm:$0xff] %vm248, %v247
        %250 = vrot.lane.b32.xlu0 %v186, 64
        %v251 = vpop.permute.xlu0 %250
        %v253 = vsel %vm189, %v251, 0.0
        %254 = vadd.xlane.f32.xlu0 %v253
        %v255 = vpop.xlane.xlu0 %254
        %v256 = vmul.f32 %v255, %v193
        %v257 = vsub.f32 %v186, %v256
        %v258 = vmul.f32 %v257, %v257
        %260 = vrot.lane.b32.xlu0 %v258, 64
        %v261 = vpop.permute.xlu0 %260
        %v263 = vsel %vm189, %v261, 0.0
        %264 = vadd.xlane.f32.xlu0 %v263
        %v265 = vpop.xlane.xlu0 %264
        %v266 = vmul.f32 %v265, %v193
        %v267 = vadd.f32 %v266, 1e-05
        %v268 = vrsqrt.pop %v267
        %v269 = vmul.f32 %v257, %v268
        %270 = vrot.lane.b32.xlu0 %v208, 64
        %v271 = vpop.permute.xlu0 %270
        %v273 = vmul.f32 %v269, %v271
        %274 = vrot.lane.b32.xlu0 %v215, 64
        %v275 = vpop.permute.xlu0 %274
        %v277 = vadd.f32 %v273, %v275
        %vm278 = vcmask 785920
        %279 = vst.msk [vmem:[%s185] sm:$0xff] %vm278, %v277
        %280 = vrot.lane.b32.xlu0 %v186, 32
        %v281 = vpop.permute.xlu0 %280
        %v283 = vsel %vm189, %v281, 0.0
        %284 = vadd.xlane.f32.xlu0 %v283
        %v285 = vpop.xlane.xlu0 %284
        %v286 = vmul.f32 %v285, %v193
        %v287 = vsub.f32 %v186, %v286
        %v288 = vmul.f32 %v287, %v287
        %290 = vrot.lane.b32.xlu0 %v288, 32
        %v291 = vpop.permute.xlu0 %290
        %v293 = vsel %vm189, %v291, 0.0
        %294 = vadd.xlane.f32.xlu0 %v293
        %v295 = vpop.xlane.xlu0 %294
        %v296 = vmul.f32 %v295, %v193
        %v297 = vadd.f32 %v296, 1e-05
        %v298 = vrsqrt.pop %v297
        %v299 = vmul.f32 %v287, %v298
        %300 = vrot.lane.b32.xlu0 %v208, 96
        %v301 = vpop.permute.xlu0 %300
        %v303 = vmul.f32 %v299, %v301
        %304 = vrot.lane.b32.xlu0 %v215, 96
        %v305 = vpop.permute.xlu0 %304
        %v307 = vadd.f32 %v303, %v305
        %vm308 = vcmask 1048320
        %309 = vst.msk [vmem:[%s185] sm:$0xff] %vm308, %v307
        %s310 = sand.u32 %s96, 1
        %s311 = scalar_lea.sflag [#allocation4], %s310
        %s312 = sand.u32 %s96, 1
        %s313 = smul.addr %s312, 8
        %s314 = scalar_lea.vmem [#allocation5], %s313
        // Predicated region
        $region37: #{tpu_custom_call.1} parent=31 // pred_check
          %p315 = pneg %p106
        $region38: #{tpu_custom_call.1} parent=31 // pred_check_branch
          %317 = sbr.rel (%p315) target = $region40
        $region39: #{tpu_custom_call.1} parent=31 // pred_region
          %s319 = ssub.s32 128, 128
          %320 = vsyncadd %s311, %s319
          %s321 = smul.addr %s20, 128
          %s322 = scalar_lea.hbm %s3, %s321
          %s324 = sshll.u32 %s314, 4
          %s325 = int_to_ptr.vmem [resolvable:$true] %s324
          %327 = dma.vmem_to_hbm [thread:$0]  %s325, 128, %s322, %s311
        $region40: #{tpu_custom_call.1} parent=31 // pred_fallthru
          _
      $region32: #{tpu_custom_call.1} parent=5 // pred_fallthru
        _
      %p328 = scmp.le.s32.totalorder 2, %s15
      // Predicated region
      $region41: #{tpu_custom_call.1} parent=5 // pred_check
        %p329 = pneg %p328
      $region42: #{tpu_custom_call.1} parent=5 // pred_check_branch
        %331 = sbr.rel (%p329) target = $region44
      $region43: #{tpu_custom_call.1} parent=5 // pred_region
        %s332 = ssub.s32 %s15, 2
        // Predicated region
        $region45: #{tpu_custom_call.1} parent=43 // pred_check
          %p333 = pneg %p112
        $region46: #{tpu_custom_call.1} parent=43 // pred_check_branch
          %335 = sbr.rel (%p333) target = $region48
        $region47: #{tpu_custom_call.1} parent=43 // pred_region
          %s336 = sand.u32 %s97, 1
          %s337 = scalar_lea.sflag [#allocation4], %s336
          %s338 = sand.u32 %s97, 1
          %s339 = smul.addr %s338, 8
          %s340 = scalar_lea.vmem [#allocation5], %s339
          %341 = dma.done %s337, 128
        $region48: #{tpu_custom_call.1} parent=43 // pred_fallthru
          _
      $region44: #{tpu_custom_call.1} parent=5 // pred_fallthru
        _
    $region6: #{tpu_custom_call.1} parent=1 // loop_footer
      %s19 = sadd.s32 1, %s15
    $region7: #{tpu_custom_call.1} parent=1 // loop_footer_branch
      %14 = sbr.rel target = $region3
    $region8: #{tpu_custom_call.1} parent=1 // loop_exit
      _
    %342 = vsyncpa [#allocation3], 1
    %s343 = scalar_lea.sflag [#allocation3], 1
    %344 = vsyncpa %s343, 1
    %345 = vsyncpa [#allocation4], 1
    %s346 = scalar_lea.sflag [#allocation4], 1
    %347 = vsyncpa %s346, 1

</llo_original>
